<compile_context>
chip_gen: v6e
topology: v6e:2x2x1
jax: 0.10.0
libtpu: 0.0.40
codegen_flags: <defaults>
</compile_context>

<pallas_src>
import jax
import jax.numpy as jnp
from jax.experimental import pallas as pl
from jax.experimental.pallas import tpu as pltpu

EPS = 1e-08
LANES = 128
MAX_TILE_LANES = 65536       # cap so multi-step pipelining still kicks in for huge maps
SMALL_BYPASS_LANES = 2048    # below this, fused plain-jnp beats a kernel launch


def _round_up(x, m):
    return ((x + m - 1) // m) * m


def _vmem_capacity_bytes():
    try:
        info = pltpu.get_tpu_info()
        cap = getattr(info, "vmem_capacity_bytes", None)
        if cap:
            return int(cap)
    except Exception:
        pass
    return 64 << 20          # conservative fallback (v7x per-TC VMEM)


def _vmem_limit_bytes():
    cap = _vmem_capacity_bytes()
    # v5e/v6e (128 MiB physical) -> 96 MiB scoped; v7x (64 MiB) -> 48 MiB scoped.
    return max(32 << 20, min(cap - (16 << 20), 96 << 20))


def _pick_tile(C, M, itemsize, vmem_limit, max_tile_lanes):
    """Largest lane tile that fits the double-buffered VMEM budget."""
    sub = max(8, 32 // itemsize)                 # sublane packing of the input dtype
    c_pad = _round_up(C, sub)                    # a (C, tile) block occupies c_pad sublanes
    per_lane = (2 * 2 * c_pad * itemsize         # a, b: double-buffered input blocks
                + 2 * 8 * 4                      # w (f32, padded to 8 sublanes), double-buffered
                + 8 * 4)                         # (1, tile) f32 accumulator scratch
    tile = int(vmem_limit * 0.7) // per_lane     # leave headroom for Mosaic internals
    tile = min(tile, max_tile_lanes, _round_up(M, LANES))
    return max(LANES, (tile // LANES) * LANES)


def _masked_smooth_l1(a_ref, b_ref, w_ref):
    """(C, T) branch-free Huber terms, zeroed where the (1, T) mask != 1."""
    a = a_ref[...].astype(jnp.float32)
    b = b_ref[...].astype(jnp.float32)
    sel = w_ref[...] == 1.0                      # (1, T), broadcasts over C
    d = jnp.where(sel, a - b, 0.0)               # masked-out lanes excluded exactly
    ad = jnp.abs(d)
    t = jnp.minimum(ad, 1.0)
    return t * (ad - 0.5 * t)                    # == 0.5*d^2 if |d|<1 else |d|-0.5


def _smooth_l1_sum_single_kernel(a_ref, b_ref, w_ref, o_ref):
    # steps == 1 fast path: no scratch, no phase predication.
    total = jnp.sum(_masked_smooth_l1(a_ref, b_ref, w_ref))
    o_ref[...] = jnp.full(o_ref.shape, total, jnp.float32)


def _smooth_l1_sum_kernel(a_ref, b_ref, w_ref, o_ref, acc_ref):
    i = pl.program_id(0)

    @pl.when(i == 0)
    def _init():
        acc_ref[...] = jnp.zeros_like(acc_ref)

    per = _masked_smooth_l1(a_ref, b_ref, w_ref)
    # In-step sublane (C) reduce goes to the XLU (otherwise-idle slot); keeps the
    # resident accumulator at (1, tile) so the per-step VMEM RMW is ~C x smaller.
    acc_ref[...] += jnp.sum(per, axis=0, keepdims=True)

    @pl.when(i == pl.num_programs(0) - 1)
    def _finalize():
        total = jnp.sum(acc_ref[...])            # single deferred cross-lane reduce
        o_ref[...] = jnp.full(o_ref.shape, total, jnp.float32)


def _smooth_l1_masked_sum_jnp(a, b, w):
    sel = w == 1.0
    d = jnp.where(sel, a.astype(jnp.float32) - b.astype(jnp.float32), 0.0)
    ad = jnp.abs(d)
    t = jnp.minimum(ad, 1.0)
    return jnp.sum(t * (ad - 0.5 * t))


def smooth_l1_masked_sum(a, b, w, *, max_tile_lanes=MAX_TILE_LANES, allow_bypass=True):
    """a, b: (C, M); w: (1, M). Returns scalar sum of smooth-L1 where w == 1."""
    C, M = a.shape
    w = w.astype(jnp.float32)

    if allow_bypass and M <= SMALL_BYPASS_LANES:
        # Kernel-launch + grid overhead dwarfs the work; XLA fuses this anyway.
        return _smooth_l1_masked_sum_jnp(a, b, w)

    itemsize = jnp.dtype(a.dtype).itemsize
    vmem_limit = _vmem_limit_bytes()
    tile = _pick_tile(C, M, itemsize, vmem_limit, max_tile_lanes)
    steps = pl.cdiv(M, tile)
    m_pad = steps * tile
    if m_pad != M:
        a = jnp.pad(a, ((0, 0), (0, m_pad - M)))
        b = jnp.pad(b, ((0, 0), (0, m_pad - M)))
        w = jnp.pad(w, ((0, 0), (0, m_pad - M)))   # pad weights are 0 -> excluded

    cost = pl.CostEstimate(
        flops=7 * C * m_pad,
        transcendentals=0,
        bytes_accessed=2 * C * m_pad * itemsize + m_pad * 4 + LANES * 4,
    )

    if steps == 1:
        out = pl.pallas_call(
            _smooth_l1_sum_single_kernel,
            out_shape=jax.ShapeDtypeStruct((1, LANES), jnp.float32),
            compiler_params=pltpu.CompilerParams(vmem_limit_bytes=vmem_limit),
            cost_estimate=cost,
        )(a, b, w)
        return out[0, 0]

    out = pl.pallas_call(
        _smooth_l1_sum_kernel,
        out_shape=jax.ShapeDtypeStruct((1, LANES), jnp.float32),
        grid_spec=pltpu.PrefetchScalarGridSpec(
            num_scalar_prefetch=0,
            grid=(steps,),
            in_specs=[
                pl.BlockSpec((C, tile), lambda i: (0, i)),
                pl.BlockSpec((C, tile), lambda i: (0, i)),
                pl.BlockSpec((1, tile), lambda i: (0, i)),
            ],
            out_specs=pl.BlockSpec((1, LANES), lambda i: (0, 0)),
            scratch_shapes=[pltpu.VMEM((1, tile), jnp.float32)],
        ),
        compiler_params=pltpu.CompilerParams(
            dimension_semantics=("arbitrary",),
            vmem_limit_bytes=vmem_limit,
        ),
        cost_estimate=cost,
    )(a, b, w)
    return out[0, 0]


def reg_loss_l1(out, target, matched_pair_or_mask, use_hungarian_match=False):
    """JAX/Pallas port of RegLossL1.forward.

    out, target: (C, H, W) float (native dtype kept; upcast happens in-kernel)
    matched_pair_or_mask: (pred_index, gt_index) with shape (N, 2) each, or an (H, W) mask.
    """
    if use_hungarian_match:
        pred_idx, gt_idx = matched_pair_or_mask
        # Dynamic peak gather is plain-JAX glue; N is tiny -> the fused-jnp bypass
        # handles the reduction (no extra HBM roundtrip or kernel launch).
        a = out[:, pred_idx[:, 0].astype(jnp.int32), pred_idx[:, 1].astype(jnp.int32)]
        b = target[:, gt_idx[:, 0].astype(jnp.int32), gt_idx[:, 1].astype(jnp.int32)]
        w = jnp.ones((1, a.shape[1]), jnp.float32)
    else:
        mask = matched_pair_or_mask
        C, H, W = out.shape
        a = out.reshape(C, H * W)
        b = target.reshape(C, H * W)
        w = mask.reshape(1, H * W).astype(jnp.float32)

    loss = smooth_l1_masked_sum(a, b, w)
    # TODO(synk): original does a host-side np.isnan(loss.item()) (sync point);
    # here it is a traced select with identical numerics (EPS cannot create/remove NaN).
    return jnp.where(jnp.isnan(loss), jnp.float32(0.0), loss + jnp.float32(EPS))


def _smooth_l1_ref(a, b):
    d = a - b
    ad = jnp.abs(d)
    return jnp.where(ad < 1.0, 0.5 * d * d, ad - 0.5)


if __name__ == "__main__":
    key = jax.random.PRNGKey(0)
    k1, k2, k3, k4, k5, k6, k7 = jax.random.split(key, 7)
    C = 4

    def check(got, want, name):
        got = float(got)
        want = float(want)
        assert abs(got - want) < 1e-3 * max(1.0, abs(want)), (name, got, want)

    # --- 1. small mask path (plain-jnp bypass) ---
    H = W = 16
    out_s = jax.random.normal(k1, (C, H, W), jnp.float32) * 2.0
    tgt_s = jax.random.normal(k2, (C, H, W), jnp.float32) * 2.0
    mask_s = (jax.random.uniform(k3, (H, W)) > 0.7).astype(jnp.float32)
    loss_s = jax.block_until_ready(reg_loss_l1(out_s, tgt_s, mask_s))
    ref_s = jnp.sum(jnp.where((mask_s == 1)[None], _smooth_l1_ref(out_s, tgt_s), 0.0)) + EPS
    check(loss_s, ref_s, "mask/bypass")

    # --- 2. larger mask path (single-step Pallas kernel) ---
    H = W = 64
    out_l = jax.random.normal(k4, (C, H, W), jnp.float32) * 2.0
    tgt_l = jax.random.normal(k5, (C, H, W), jnp.float32) * 2.0
    mask_l = (jax.random.uniform(k6, (H, W)) > 0.7).astype(jnp.float32)
    loss_l = jax.block_until_ready(reg_loss_l1(out_l, tgt_l, mask_l))
    ref_sum = jnp.sum(jnp.where((mask_l == 1)[None], _smooth_l1_ref(out_l, tgt_l), 0.0))
    check(loss_l, ref_sum + EPS, "mask/kernel-single-step")

    # --- 3. same data through the multi-step reduction grid (forced small tile) ---
    a = out_l.reshape(C, H * W)
    b = tgt_l.reshape(C, H * W)
    w = mask_l.reshape(1, H * W)
    loss_g = jax.block_until_ready(
        smooth_l1_masked_sum(a, b, w, max_tile_lanes=1024, allow_bypass=False))
    check(loss_g, ref_sum, "mask/kernel-gridded")

    # --- 4. hungarian-match path (tiny N -> bypass) ---
    N = 8
    rows_p = jax.random.randint(k7, (N,), 0, 16)
    cols_p = (rows_p * 3 + 1) % 16
    pred_idx = jnp.stack([rows_p, cols_p], axis=1)
    gt_idx = jnp.stack([(rows_p + 1) % 16, (cols_p + 2) % 16], axis=1)
    loss_h = jax.block_until_ready(
        reg_loss_l1(out_s, tgt_s, (pred_idx, gt_idx), use_hungarian_match=True))
    a_g = out_s[:, pred_idx[:, 0], pred_idx[:, 1]]
    b_g = tgt_s[:, gt_idx[:, 0], gt_idx[:, 1]]
    check(loss_h, jnp.sum(_smooth_l1_ref(a_g, b_g)) + EPS, "hungarian/bypass")

    print("KERNEL_OK")
</pallas_src>

<mosaic_0001>
module attributes {stable_mosaic.version = 11 : i64} {
  func.func @_smooth_l1_sum_single_kernel(%arg0: memref<4x4096xf32, #tpu.memory_space<vmem>>, %arg1: memref<4x4096xf32, #tpu.memory_space<vmem>>, %arg2: memref<1x4096xf32, #tpu.memory_space<vmem>>, %arg3: memref<1x128xf32, #tpu.memory_space<vmem>>) attributes {dimension_semantics = [], scalar_prefetch = 0 : i64, scratch_operands = 0 : i64, tpu.core_type = #tpu.core_type<tc>} {
    %c0 = arith.constant 0 : index
    %c0_0 = arith.constant 0 : index
    %0 = vector.load %arg0[%c0, %c0_0] : memref<4x4096xf32, #tpu.memory_space<vmem>>, vector<4x4096xf32>
    %c0_1 = arith.constant 0 : index
    %c0_2 = arith.constant 0 : index
    %1 = vector.load %arg1[%c0_1, %c0_2] : memref<4x4096xf32, #tpu.memory_space<vmem>>, vector<4x4096xf32>
    %c0_3 = arith.constant 0 : index
    %c0_4 = arith.constant 0 : index
    %2 = vector.load %arg2[%c0_3, %c0_4] : memref<1x4096xf32, #tpu.memory_space<vmem>>, vector<1x4096xf32>
    %cst = arith.constant 1.000000e+00 : f32
    %3 = vector.broadcast %cst : f32 to vector<1x4096xf32>
    %4 = arith.cmpf oeq, %2, %3 : vector<1x4096xf32>
    %5 = arith.subf %0, %1 : vector<4x4096xf32>
    %cst_5 = arith.constant 0.000000e+00 : f32
    %6 = vector.shape_cast %4 : vector<1x4096xi1> to vector<1x4096xi1>
    %7 = vector.broadcast %6 : vector<1x4096xi1> to vector<4x4096xi1>
    %8 = vector.broadcast %cst_5 : f32 to vector<4x4096xf32>
    %9 = arith.select %7, %5, %8 : vector<4x4096xi1>, vector<4x4096xf32>
    %10 = math.absf %9 : vector<4x4096xf32>
    %cst_6 = arith.constant 1.000000e+00 : f32
    %11 = vector.broadcast %cst_6 : f32 to vector<4x4096xf32>
    %12 = arith.minimumf %10, %11 : vector<4x4096xf32>
    %cst_7 = arith.constant 5.000000e-01 : f32
    %13 = vector.broadcast %cst_7 : f32 to vector<4x4096xf32>
    %14 = arith.mulf %13, %12 : vector<4x4096xf32>
    %15 = arith.subf %10, %14 : vector<4x4096xf32>
    %16 = arith.mulf %12, %15 : vector<4x4096xf32>
    %17 = vector.shape_cast %16 : vector<4x4096xf32> to vector<1x4x4096xf32>
    %cst_8 = arith.constant dense<0.000000e+00> : vector<1xf32>
    %18 = vector.multi_reduction <add>, %17, %cst_8 [1, 2] : vector<1x4x4096xf32> to vector<1xf32>
    %19 = vector.shape_cast %18 : vector<1xf32> to vector<1x1x1xf32>
    %20 = vector.extract %19[0, 0, 0] : f32 from vector<1x1x1xf32>
    %21 = vector.broadcast %20 : f32 to vector<1x128xf32>
    %c0_9 = arith.constant 0 : index
    %c0_10 = arith.constant 0 : index
    %22 = vector.load %arg3[%c0_9, %c0_10] : memref<1x128xf32, #tpu.memory_space<vmem>>, vector<1x128xf32>
    tpu.vector_store %arg3[%c0_9, %c0_10], %21 {strides = array<i32>} : memref<1x128xf32, #tpu.memory_space<vmem>>, vector<1x128xf32>,
    return
  }
}

</mosaic_0001>

<llo_original>
// kernel: tpu_custom_call.1
$region0: #{tpu_custom_call.1}
  #allocation0 [shape = 'u32[]', space=smem, size = 0x4, offset = 0x4, fixed_abs, tag = 'smem constant byte address 0x4 - core index']
  #allocation1 [shape = 'u32[144,128]{1,0:T(1,128)}', space=vmem, size = 0x12000, scoped, tag = 'internal scratch']
  %s0 = inlined_call_operand.hbm [shape: f32[4,4096], index: 0, kind: input, shape index: {}]
  %s1 = inlined_call_operand.hbm [shape: f32[4,4096], index: 1, kind: input, shape index: {}]
  %s2 = inlined_call_operand.hbm [shape: f32[1,4096], index: 2, kind: input, shape index: {}]
  %s3 = inlined_call_operand.hbm [shape: f32[1,128], index: 3, kind: output, shape index: {}]
  %s4 = sld [smem:[#allocation0]]
  $region34: #{tpu_custom_call.1} parent=0
    _
  %s6 = ssub.s32 1, %s4
  %s7 = scalar_select 0, %s6, %s4
  $region1: #{tpu_custom_call.1} parent=0
    #allocation2 [shape = 'u8[65536]{0}', space=vmem, size = 0x10000, scoped, tag = 'input window, operand 0, single buffered']
    #allocation3 [shape = 's32[1]{0}', space=sflag, size = 0x4, scoped, tag = 'scoped memory for tpu_custom_call.1']
    #allocation4 [shape = 's32[1]{0}', space=sflag, size = 0x4, scoped, tag = 'scoped memory for tpu_custom_call.1']
    #allocation5 [shape = 'u8[65536]{0}', space=vmem, size = 0x10000, scoped, tag = 'input window, operand 1, single buffered']
    #allocation6 [shape = 's32[1]{0}', space=sflag, size = 0x4, scoped, tag = 'scoped memory for tpu_custom_call.1']
    #allocation7 [shape = 'u8[16384]{0}', space=vmem, size = 0x4000, scoped, tag = 'input window, operand 2, single buffered']
    #allocation8 [shape = 'u8[512]{0}', space=vmem, size = 0x400, scoped, tag = 'output window, operand 0, single buffered']
    %8 = vsyncpa [#allocation3], 0
    %9 = vsyncpa [#allocation6], 0
    %10 = vsyncpa [#allocation4], 0
    // Predicated region
    $region2: #{tpu_custom_call.1} parent=1 // pred_check
      _
    $region3: #{tpu_custom_call.1} parent=1 // pred_check_branch
      %12 = sbr.rel (0) target = $region5
    $region4: #{tpu_custom_call.1} parent=1 // pred_region
      %s14 = ssub.s32 2048, 2048
      %15 = vsyncadd [#allocation3], %s14
      %s17 = sshll.u32 [#allocation2], 4
      %s18 = int_to_ptr.vmem [resolvable:$true] %s17
      %20 = dma.hbm_to_vmem [thread:$0]  %s0, 2048, %s18, [#allocation3]
    $region5: #{tpu_custom_call.1} parent=1 // pred_fallthru
      _
    // Predicated region
    $region6: #{tpu_custom_call.1} parent=1 // pred_check
      _
    $region7: #{tpu_custom_call.1} parent=1 // pred_check_branch
      %22 = sbr.rel (0) target = $region9
    $region8: #{tpu_custom_call.1} parent=1 // pred_region
      %s24 = ssub.s32 2048, 2048
      %25 = vsyncadd [#allocation6], %s24
      %s27 = sshll.u32 [#allocation5], 4
      %s28 = int_to_ptr.vmem [resolvable:$true] %s27
      %30 = dma.hbm_to_vmem [thread:$0]  %s1, 2048, %s28, [#allocation6]
    $region9: #{tpu_custom_call.1} parent=1 // pred_fallthru
      _
    // Predicated region
    $region10: #{tpu_custom_call.1} parent=1 // pred_check
      _
    $region11: #{tpu_custom_call.1} parent=1 // pred_check_branch
      %32 = sbr.rel (0) target = $region13
    $region12: #{tpu_custom_call.1} parent=1 // pred_region
      %s34 = ssub.s32 512, 512
      %35 = vsyncadd [#allocation6], %s34
      %s37 = sshll.u32 [#allocation7], 4
      %s38 = int_to_ptr.vmem [resolvable:$true] %s37
      %40 = dma.hbm_to_vmem [thread:$0]  %s2, 512, %s38, [#allocation6]
    $region13: #{tpu_custom_call.1} parent=1 // pred_fallthru
      _
    // Predicated region
    $region14: #{tpu_custom_call.1} parent=1 // pred_check
      _
    $region15: #{tpu_custom_call.1} parent=1 // pred_check_branch
      %42 = sbr.rel (0) target = $region17
    $region16: #{tpu_custom_call.1} parent=1 // pred_region
      %43 = dma.done [#allocation3], 2048
    $region17: #{tpu_custom_call.1} parent=1 // pred_fallthru
      _
    // Predicated region
    $region18: #{tpu_custom_call.1} parent=1 // pred_check
      _
    $region19: #{tpu_custom_call.1} parent=1 // pred_check_branch
      %45 = sbr.rel (0) target = $region21
    $region20: #{tpu_custom_call.1} parent=1 // pred_region
      %46 = dma.done [#allocation6], 2048
    $region21: #{tpu_custom_call.1} parent=1 // pred_fallthru
      _
    // Predicated region
    $region22: #{tpu_custom_call.1} parent=1 // pred_check
      _
    $region23: #{tpu_custom_call.1} parent=1 // pred_check_branch
      %48 = sbr.rel (0) target = $region25
    $region24: #{tpu_custom_call.1} parent=1 // pred_region
      %49 = dma.done [#allocation6], 512
    $region25: #{tpu_custom_call.1} parent=1 // pred_fallthru
      _
    %v50 = vld [vmem:[#allocation2] sm:$0xff]
    %v51 = vld [vmem:[#allocation2 + $0x8] sm:$0xff]
    %v52 = vld [vmem:[#allocation2 + $0x10] sm:$0xff]
    %v53 = vld [vmem:[#allocation2 + $0x18] sm:$0xff]
    %v54 = vld [vmem:[#allocation2 + $0x20] sm:$0xff]
    %v55 = vld [vmem:[#allocation2 + $0x28] sm:$0xff]
    %v56 = vld [vmem:[#allocation2 + $0x30] sm:$0xff]
    %v57 = vld [vmem:[#allocation2 + $0x38] sm:$0xff]
    %v58 = vld [vmem:[#allocation2 + $0x40] sm:$0xff]
    %v59 = vld [vmem:[#allocation2 + $0x48] sm:$0xff]
    %v60 = vld [vmem:[#allocation2 + $0x50] sm:$0xff]
    %v61 = vld [vmem:[#allocation2 + $0x58] sm:$0xff]
    %v62 = vld [vmem:[#allocation2 + $0x60] sm:$0xff]
    %v63 = vld [vmem:[#allocation2 + $0x68] sm:$0xff]
    %v64 = vld [vmem:[#allocation2 + $0x70] sm:$0xff]
    %v65 = vld [vmem:[#allocation2 + $0x78] sm:$0xff]
    %v66 = vld [vmem:[#allocation5] sm:$0xff]
    %v67 = vld [vmem:[#allocation5 + $0x8] sm:$0xff]
    %v68 = vld [vmem:[#allocation5 + $0x10] sm:$0xff]
    %v69 = vld [vmem:[#allocation5 + $0x18] sm:$0xff]
    %v70 = vld [vmem:[#allocation5 + $0x20] sm:$0xff]
    %v71 = vld [vmem:[#allocation5 + $0x28] sm:$0xff]
    %v72 = vld [vmem:[#allocation5 + $0x30] sm:$0xff]
    %v73 = vld [vmem:[#allocation5 + $0x38] sm:$0xff]
    %v74 = vld [vmem:[#allocation5 + $0x40] sm:$0xff]
    %v75 = vld [vmem:[#allocation5 + $0x48] sm:$0xff]
    %v76 = vld [vmem:[#allocation5 + $0x50] sm:$0xff]
    %v77 = vld [vmem:[#allocation5 + $0x58] sm:$0xff]
    %v78 = vld [vmem:[#allocation5 + $0x60] sm:$0xff]
    %v79 = vld [vmem:[#allocation5 + $0x68] sm:$0xff]
    %v80 = vld [vmem:[#allocation5 + $0x70] sm:$0xff]
    %v81 = vld [vmem:[#allocation5 + $0x78] sm:$0xff]
    %v82 = vld [vmem:[#allocation7] sm:$0xff]
    %v83 = vld [vmem:[#allocation7 + $0x8] sm:$0xff]
    %v84 = vld [vmem:[#allocation7 + $0x10] sm:$0xff]
    %v85 = vld [vmem:[#allocation7 + $0x18] sm:$0xff]
    %vm86 = vcmp.eq.f32.partialorder %v82, 1.0
    %vm87 = vcmp.eq.f32.partialorder %v83, 1.0
    %vm88 = vcmp.eq.f32.partialorder %v84, 1.0
    %vm89 = vcmp.eq.f32.partialorder %v85, 1.0
    %v90 = vsub.f32 %v50, %v66
    %v91 = vsub.f32 %v51, %v67
    %v92 = vsub.f32 %v52, %v68
    %v93 = vsub.f32 %v53, %v69
    %v94 = vsub.f32 %v54, %v70
    %v95 = vsub.f32 %v55, %v71
    %v96 = vsub.f32 %v56, %v72
    %v97 = vsub.f32 %v57, %v73
    %v98 = vsub.f32 %v58, %v74
    %v99 = vsub.f32 %v59, %v75
    %v100 = vsub.f32 %v60, %v76
    %v101 = vsub.f32 %v61, %v77
    %v102 = vsub.f32 %v62, %v78
    %v103 = vsub.f32 %v63, %v79
    %v104 = vsub.f32 %v64, %v80
    %v105 = vsub.f32 %v65, %v81
    %v106 = vsel %vm86, 1, 0
    %v107 = vsel %vm87, 1, 0
    %v108 = vsel %vm88, 1, 0
    %v109 = vsel %vm89, 1, 0
    %v110 = vlaneseq
    %v111 = vshrl.u32 %v110, 7
    %v112 = vsub.s32 0, %v111
    %v113 = vrot.slane %v106, %v112
    %v114 = vlaneseq
    %v115 = vshrl.u32 %v114, 7
    %v116 = vsub.s32 1, %v115
    %v117 = vrot.slane %v106, %v116
    %v118 = vlaneseq
    %v119 = vshrl.u32 %v118, 7
    %v120 = vsub.s32 2, %v119
    %v121 = vrot.slane %v106, %v120
    %v122 = vlaneseq
    %v123 = vshrl.u32 %v122, 7
    %v124 = vsub.s32 3, %v123
    %v125 = vrot.slane %v106, %v124
    %v126 = vlaneseq
    %v127 = vshrl.u32 %v126, 7
    %v128 = vsub.s32 4, %v127
    %v129 = vrot.slane %v106, %v128
    %v130 = vlaneseq
    %v131 = vshrl.u32 %v130, 7
    %v132 = vsub.s32 5, %v131
    %v133 = vrot.slane %v106, %v132
    %v134 = vlaneseq
    %v135 = vshrl.u32 %v134, 7
    %v136 = vsub.s32 6, %v135
    %v137 = vrot.slane %v106, %v136
    %v138 = vlaneseq
    %v139 = vshrl.u32 %v138, 7
    %v140 = vsub.s32 7, %v139
    %v141 = vrot.slane %v106, %v140
    %v142 = vlaneseq
    %v143 = vshrl.u32 %v142, 7
    %v144 = vsub.s32 0, %v143
    %v145 = vrot.slane %v107, %v144
    %v146 = vlaneseq
    %v147 = vshrl.u32 %v146, 7
    %v148 = vsub.s32 1, %v147
    %v149 = vrot.slane %v107, %v148
    %v150 = vlaneseq
    %v151 = vshrl.u32 %v150, 7
    %v152 = vsub.s32 2, %v151
    %v153 = vrot.slane %v107, %v152
    %v154 = vlaneseq
    %v155 = vshrl.u32 %v154, 7
    %v156 = vsub.s32 3, %v155
    %v157 = vrot.slane %v107, %v156
    %v158 = vlaneseq
    %v159 = vshrl.u32 %v158, 7
    %v160 = vsub.s32 4, %v159
    %v161 = vrot.slane %v107, %v160
    %v162 = vlaneseq
    %v163 = vshrl.u32 %v162, 7
    %v164 = vsub.s32 5, %v163
    %v165 = vrot.slane %v107, %v164
    %v166 = vlaneseq
    %v167 = vshrl.u32 %v166, 7
    %v168 = vsub.s32 6, %v167
    %v169 = vrot.slane %v107, %v168
    %v170 = vlaneseq
    %v171 = vshrl.u32 %v170, 7
    %v172 = vsub.s32 7, %v171
    %v173 = vrot.slane %v107, %v172
    %v174 = vlaneseq
    %v175 = vshrl.u32 %v174, 7
    %v176 = vsub.s32 0, %v175
    %v177 = vrot.slane %v108, %v176
    %v178 = vlaneseq
    %v179 = vshrl.u32 %v178, 7
    %v180 = vsub.s32 1, %v179
    %v181 = vrot.slane %v108, %v180
    %v182 = vlaneseq
    %v183 = vshrl.u32 %v182, 7
    %v184 = vsub.s32 2, %v183
    %v185 = vrot.slane %v108, %v184
    %v186 = vlaneseq
    %v187 = vshrl.u32 %v186, 7
    %v188 = vsub.s32 3, %v187
    %v189 = vrot.slane %v108, %v188
    %v190 = vlaneseq
    %v191 = vshrl.u32 %v190, 7
    %v192 = vsub.s32 4, %v191
    %v193 = vrot.slane %v108, %v192
    %v194 = vlaneseq
    %v195 = vshrl.u32 %v194, 7
    %v196 = vsub.s32 5, %v195
    %v197 = vrot.slane %v108, %v196
    %v198 = vlaneseq
    %v199 = vshrl.u32 %v198, 7
    %v200 = vsub.s32 6, %v199
    %v201 = vrot.slane %v108, %v200
    %v202 = vlaneseq
    %v203 = vshrl.u32 %v202, 7
    %v204 = vsub.s32 7, %v203
    %v205 = vrot.slane %v108, %v204
    %v206 = vlaneseq
    %v207 = vshrl.u32 %v206, 7
    %v208 = vsub.s32 0, %v207
    %v209 = vrot.slane %v109, %v208
    %v210 = vlaneseq
    %v211 = vshrl.u32 %v210, 7
    %v212 = vsub.s32 1, %v211
    %v213 = vrot.slane %v109, %v212
    %v214 = vlaneseq
    %v215 = vshrl.u32 %v214, 7
    %v216 = vsub.s32 2, %v215
    %v217 = vrot.slane %v109, %v216
    %v218 = vlaneseq
    %v219 = vshrl.u32 %v218, 7
    %v220 = vsub.s32 3, %v219
    %v221 = vrot.slane %v109, %v220
    %v222 = vlaneseq
    %v223 = vshrl.u32 %v222, 7
    %v224 = vsub.s32 4, %v223
    %v225 = vrot.slane %v109, %v224
    %v226 = vlaneseq
    %v227 = vshrl.u32 %v226, 7
    %v228 = vsub.s32 5, %v227
    %v229 = vrot.slane %v109, %v228
    %v230 = vlaneseq
    %v231 = vshrl.u32 %v230, 7
    %v232 = vsub.s32 6, %v231
    %v233 = vrot.slane %v109, %v232
    %v234 = vlaneseq
    %v235 = vshrl.u32 %v234, 7
    %v236 = vsub.s32 7, %v235
    %v237 = vrot.slane %v109, %v236
    %vm238 = vcmp.eq.s32.totalorder %v113, 1
    %vm239 = vcmp.eq.s32.totalorder %v117, 1
    %vm240 = vcmp.eq.s32.totalorder %v121, 1
    %vm241 = vcmp.eq.s32.totalorder %v125, 1
    %vm242 = vcmp.eq.s32.totalorder %v129, 1
    %vm243 = vcmp.eq.s32.totalorder %v133, 1
    %vm244 = vcmp.eq.s32.totalorder %v137, 1
    %vm245 = vcmp.eq.s32.totalorder %v141, 1
    %vm246 = vcmp.eq.s32.totalorder %v145, 1
    %vm247 = vcmp.eq.s32.totalorder %v149, 1
    %vm248 = vcmp.eq.s32.totalorder %v153, 1
    %vm249 = vcmp.eq.s32.totalorder %v157, 1
    %vm250 = vcmp.eq.s32.totalorder %v161, 1
    %vm251 = vcmp.eq.s32.totalorder %v165, 1
    %vm252 = vcmp.eq.s32.totalorder %v169, 1
    %vm253 = vcmp.eq.s32.totalorder %v173, 1
    %vm254 = vcmp.eq.s32.totalorder %v177, 1
    %vm255 = vcmp.eq.s32.totalorder %v181, 1
    %vm256 = vcmp.eq.s32.totalorder %v185, 1
    %vm257 = vcmp.eq.s32.totalorder %v189, 1
    %vm258 = vcmp.eq.s32.totalorder %v193, 1
    %vm259 = vcmp.eq.s32.totalorder %v197, 1
    %vm260 = vcmp.eq.s32.totalorder %v201, 1
    %vm261 = vcmp.eq.s32.totalorder %v205, 1
    %vm262 = vcmp.eq.s32.totalorder %v209, 1
    %vm263 = vcmp.eq.s32.totalorder %v213, 1
    %vm264 = vcmp.eq.s32.totalorder %v217, 1
    %vm265 = vcmp.eq.s32.totalorder %v221, 1
    %vm266 = vcmp.eq.s32.totalorder %v225, 1
    %vm267 = vcmp.eq.s32.totalorder %v229, 1
    %vm268 = vcmp.eq.s32.totalorder %v233, 1
    %vm269 = vcmp.eq.s32.totalorder %v237, 1
    %v286 = vcombine.high %v90, %v90
    %v287 = vcombine.high %v91, %v91
    %v288 = vcombine.high %v92, %v92
    %v289 = vcombine.high %v93, %v93
    %v290 = vcombine.high %v94, %v94
    %v291 = vcombine.high %v95, %v95
    %v292 = vcombine.high %v96, %v96
    %v293 = vcombine.high %v97, %v97
    %v294 = vcombine.high %v98, %v98
    %v295 = vcombine.high %v99, %v99
    %v296 = vcombine.high %v100, %v100
    %v297 = vcombine.high %v101, %v101
    %v298 = vcombine.high %v102, %v102
    %v299 = vcombine.high %v103, %v103
    %v300 = vcombine.high %v104, %v104
    %v301 = vcombine.high %v105, %v105
    %v318 = vsel %vm238, %v90, 0.0
    %v319 = vsel %vm239, %v286, 0.0
    %v320 = vsel %vm240, %v91, 0.0
    %v321 = vsel %vm241, %v287, 0.0
    %v322 = vsel %vm242, %v92, 0.0
    %v323 = vsel %vm243, %v288, 0.0
    %v324 = vsel %vm244, %v93, 0.0
    %v325 = vsel %vm245, %v289, 0.0
    %v326 = vsel %vm246, %v94, 0.0
    %v327 = vsel %vm247, %v290, 0.0
    %v328 = vsel %vm248, %v95, 0.0
    %v329 = vsel %vm249, %v291, 0.0
    %v330 = vsel %vm250, %v96, 0.0
    %v331 = vsel %vm251, %v292, 0.0
    %v332 = vsel %vm252, %v97, 0.0
    %v333 = vsel %vm253, %v293, 0.0
    %v334 = vsel %vm254, %v98, 0.0
    %v335 = vsel %vm255, %v294, 0.0
    %v336 = vsel %vm256, %v99, 0.0
    %v337 = vsel %vm257, %v295, 0.0
    %v338 = vsel %vm258, %v100, 0.0
    %v339 = vsel %vm259, %v296, 0.0
    %v340 = vsel %vm260, %v101, 0.0
    %v341 = vsel %vm261, %v297, 0.0
    %v342 = vsel %vm262, %v102, 0.0
    %v343 = vsel %vm263, %v298, 0.0
    %v344 = vsel %vm264, %v103, 0.0
    %v345 = vsel %vm265, %v299, 0.0
    %v346 = vsel %vm266, %v104, 0.0
    %v347 = vsel %vm267, %v300, 0.0
    %v348 = vsel %vm268, %v105, 0.0
    %v349 = vsel %vm269, %v301, 0.0
    %v350 = vand.u32 2147483647, %v318
    %v351 = vand.u32 2147483647, %v319
    %v352 = vand.u32 2147483647, %v320
    %v353 = vand.u32 2147483647, %v321
    %v354 = vand.u32 2147483647, %v322
    %v355 = vand.u32 2147483647, %v323
    %v356 = vand.u32 2147483647, %v324
    %v357 = vand.u32 2147483647, %v325
    %v358 = vand.u32 2147483647, %v326
    %v359 = vand.u32 2147483647, %v327
    %v360 = vand.u32 2147483647, %v328
    %v361 = vand.u32 2147483647, %v329
    %v362 = vand.u32 2147483647, %v330
    %v363 = vand.u32 2147483647, %v331
    %v364 = vand.u32 2147483647, %v332
    %v365 = vand.u32 2147483647, %v333
    %v366 = vand.u32 2147483647, %v334
    %v367 = vand.u32 2147483647, %v335
    %v368 = vand.u32 2147483647, %v336
    %v369 = vand.u32 2147483647, %v337
    %v370 = vand.u32 2147483647, %v338
    %v371 = vand.u32 2147483647, %v339
    %v372 = vand.u32 2147483647, %v340
    %v373 = vand.u32 2147483647, %v341
    %v374 = vand.u32 2147483647, %v342
    %v375 = vand.u32 2147483647, %v343
    %v376 = vand.u32 2147483647, %v344
    %v377 = vand.u32 2147483647, %v345
    %v378 = vand.u32 2147483647, %v346
    %v379 = vand.u32 2147483647, %v347
    %v380 = vand.u32 2147483647, %v348
    %v381 = vand.u32 2147483647, %v349
    %v382 = vmin.f32 %v350, 1.0
    %v383 = vmin.f32 %v351, 1.0
    %v384 = vmin.f32 %v352, 1.0
    %v385 = vmin.f32 %v353, 1.0
    %v386 = vmin.f32 %v354, 1.0
    %v387 = vmin.f32 %v355, 1.0
    %v388 = vmin.f32 %v356, 1.0
    %v389 = vmin.f32 %v357, 1.0
    %v390 = vmin.f32 %v358, 1.0
    %v391 = vmin.f32 %v359, 1.0
    %v392 = vmin.f32 %v360, 1.0
    %v393 = vmin.f32 %v361, 1.0
    %v394 = vmin.f32 %v362, 1.0
    %v395 = vmin.f32 %v363, 1.0
    %v396 = vmin.f32 %v364, 1.0
    %v397 = vmin.f32 %v365, 1.0
    %v398 = vmin.f32 %v366, 1.0
    %v399 = vmin.f32 %v367, 1.0
    %v400 = vmin.f32 %v368, 1.0
    %v401 = vmin.f32 %v369, 1.0
    %v402 = vmin.f32 %v370, 1.0
    %v403 = vmin.f32 %v371, 1.0
    %v404 = vmin.f32 %v372, 1.0
    %v405 = vmin.f32 %v373, 1.0
    %v406 = vmin.f32 %v374, 1.0
    %v407 = vmin.f32 %v375, 1.0
    %v408 = vmin.f32 %v376, 1.0
    %v409 = vmin.f32 %v377, 1.0
    %v410 = vmin.f32 %v378, 1.0
    %v411 = vmin.f32 %v379, 1.0
    %v412 = vmin.f32 %v380, 1.0
    %v413 = vmin.f32 %v381, 1.0
    %v414 = vmul.f32 %v382, 0.5
    %v415 = vmul.f32 %v383, 0.5
    %v416 = vmul.f32 %v384, 0.5
    %v417 = vmul.f32 %v385, 0.5
    %v418 = vmul.f32 %v386, 0.5
    %v419 = vmul.f32 %v387, 0.5
    %v420 = vmul.f32 %v388, 0.5
    %v421 = vmul.f32 %v389, 0.5
    %v422 = vmul.f32 %v390, 0.5
    %v423 = vmul.f32 %v391, 0.5
    %v424 = vmul.f32 %v392, 0.5
    %v425 = vmul.f32 %v393, 0.5
    %v426 = vmul.f32 %v394, 0.5
    %v427 = vmul.f32 %v395, 0.5
    %v428 = vmul.f32 %v396, 0.5
    %v429 = vmul.f32 %v397, 0.5
    %v430 = vmul.f32 %v398, 0.5
    %v431 = vmul.f32 %v399, 0.5
    %v432 = vmul.f32 %v400, 0.5
    %v433 = vmul.f32 %v401, 0.5
    %v434 = vmul.f32 %v402, 0.5
    %v435 = vmul.f32 %v403, 0.5
    %v436 = vmul.f32 %v404, 0.5
    %v437 = vmul.f32 %v405, 0.5
    %v438 = vmul.f32 %v406, 0.5
    %v439 = vmul.f32 %v407, 0.5
    %v440 = vmul.f32 %v408, 0.5
    %v441 = vmul.f32 %v409, 0.5
    %v442 = vmul.f32 %v410, 0.5
    %v443 = vmul.f32 %v411, 0.5
    %v444 = vmul.f32 %v412, 0.5
    %v445 = vmul.f32 %v413, 0.5
    %v446 = vsub.f32 %v350, %v414
    %v447 = vsub.f32 %v351, %v415
    %v448 = vsub.f32 %v352, %v416
    %v449 = vsub.f32 %v353, %v417
    %v450 = vsub.f32 %v354, %v418
    %v451 = vsub.f32 %v355, %v419
    %v452 = vsub.f32 %v356, %v420
    %v453 = vsub.f32 %v357, %v421
    %v454 = vsub.f32 %v358, %v422
    %v455 = vsub.f32 %v359, %v423
    %v456 = vsub.f32 %v360, %v424
    %v457 = vsub.f32 %v361, %v425
    %v458 = vsub.f32 %v362, %v426
    %v459 = vsub.f32 %v363, %v427
    %v460 = vsub.f32 %v364, %v428
    %v461 = vsub.f32 %v365, %v429
    %v462 = vsub.f32 %v366, %v430
    %v463 = vsub.f32 %v367, %v431
    %v464 = vsub.f32 %v368, %v432
    %v465 = vsub.f32 %v369, %v433
    %v466 = vsub.f32 %v370, %v434
    %v467 = vsub.f32 %v371, %v435
    %v468 = vsub.f32 %v372, %v436
    %v469 = vsub.f32 %v373, %v437
    %v470 = vsub.f32 %v374, %v438
    %v471 = vsub.f32 %v375, %v439
    %v472 = vsub.f32 %v376, %v440
    %v473 = vsub.f32 %v377, %v441
    %v474 = vsub.f32 %v378, %v442
    %v475 = vsub.f32 %v379, %v443
    %v476 = vsub.f32 %v380, %v444
    %v477 = vsub.f32 %v381, %v445
    %v478 = vmul.f32 %v382, %v446
    %v479 = vmul.f32 %v383, %v447
    %v480 = vmul.f32 %v384, %v448
    %v481 = vmul.f32 %v385, %v449
    %v482 = vmul.f32 %v386, %v450
    %v483 = vmul.f32 %v387, %v451
    %v484 = vmul.f32 %v388, %v452
    %v485 = vmul.f32 %v389, %v453
    %v486 = vmul.f32 %v390, %v454
    %v487 = vmul.f32 %v391, %v455
    %v488 = vmul.f32 %v392, %v456
    %v489 = vmul.f32 %v393, %v457
    %v490 = vmul.f32 %v394, %v458
    %v491 = vmul.f32 %v395, %v459
    %v492 = vmul.f32 %v396, %v460
    %v493 = vmul.f32 %v397, %v461
    %v494 = vmul.f32 %v398, %v462
    %v495 = vmul.f32 %v399, %v463
    %v496 = vmul.f32 %v400, %v464
    %v497 = vmul.f32 %v401, %v465
    %v498 = vmul.f32 %v402, %v466
    %v499 = vmul.f32 %v403, %v467
    %v500 = vmul.f32 %v404, %v468
    %v501 = vmul.f32 %v405, %v469
    %v502 = vmul.f32 %v406, %v470
    %v503 = vmul.f32 %v407, %v471
    %v504 = vmul.f32 %v408, %v472
    %v505 = vmul.f32 %v409, %v473
    %v506 = vmul.f32 %v410, %v474
    %v507 = vmul.f32 %v411, %v475
    %v508 = vmul.f32 %v412, %v476
    %v509 = vmul.f32 %v413, %v477
    %vm510 = vcmask 1043456
    %v511 = vsel %vm510, %v478, 0.0
    %v512 = vsel %vm510, %v479, 0.0
    %v513 = vadd.f32 %v511, %v512
    %v514 = vsel %vm510, %v480, 0.0
    %v515 = vadd.f32 %v513, %v514
    %v516 = vsel %vm510, %v481, 0.0
    %v517 = vadd.f32 %v515, %v516
    %v518 = vsel %vm510, %v482, 0.0
    %v519 = vadd.f32 %v517, %v518
    %v520 = vsel %vm510, %v483, 0.0
    %v521 = vadd.f32 %v519, %v520
    %v522 = vsel %vm510, %v484, 0.0
    %v523 = vadd.f32 %v521, %v522
    %v524 = vsel %vm510, %v485, 0.0
    %v525 = vadd.f32 %v523, %v524
    %v526 = vsel %vm510, %v486, 0.0
    %v527 = vadd.f32 %v525, %v526
    %v528 = vsel %vm510, %v487, 0.0
    %v529 = vadd.f32 %v527, %v528
    %v530 = vsel %vm510, %v488, 0.0
    %v531 = vadd.f32 %v529, %v530
    %v532 = vsel %vm510, %v489, 0.0
    %v533 = vadd.f32 %v531, %v532
    %v534 = vsel %vm510, %v490, 0.0
    %v535 = vadd.f32 %v533, %v534
    %v536 = vsel %vm510, %v491, 0.0
    %v537 = vadd.f32 %v535, %v536
    %v538 = vsel %vm510, %v492, 0.0
    %v539 = vadd.f32 %v537, %v538
    %v540 = vsel %vm510, %v493, 0.0
    %v541 = vadd.f32 %v539, %v540
    %v542 = vsel %vm510, %v494, 0.0
    %v543 = vadd.f32 %v541, %v542
    %v544 = vsel %vm510, %v495, 0.0
    %v545 = vadd.f32 %v543, %v544
    %v546 = vsel %vm510, %v496, 0.0
    %v547 = vadd.f32 %v545, %v546
    %v548 = vsel %vm510, %v497, 0.0
    %v549 = vadd.f32 %v547, %v548
    %v550 = vsel %vm510, %v498, 0.0
    %v551 = vadd.f32 %v549, %v550
    %v552 = vsel %vm510, %v499, 0.0
    %v553 = vadd.f32 %v551, %v552
    %v554 = vsel %vm510, %v500, 0.0
    %v555 = vadd.f32 %v553, %v554
    %v556 = vsel %vm510, %v501, 0.0
    %v557 = vadd.f32 %v555, %v556
    %v558 = vsel %vm510, %v502, 0.0
    %v559 = vadd.f32 %v557, %v558
    %v560 = vsel %vm510, %v503, 0.0
    %v561 = vadd.f32 %v559, %v560
    %v562 = vsel %vm510, %v504, 0.0
    %v563 = vadd.f32 %v561, %v562
    %v564 = vsel %vm510, %v505, 0.0
    %v565 = vadd.f32 %v563, %v564
    %v566 = vsel %vm510, %v506, 0.0
    %v567 = vadd.f32 %v565, %v566
    %v568 = vsel %vm510, %v507, 0.0
    %v569 = vadd.f32 %v567, %v568
    %v570 = vsel %vm510, %v508, 0.0
    %v571 = vadd.f32 %v569, %v570
    %v572 = vsel %vm510, %v509, 0.0
    %v573 = vadd.f32 %v571, %v572
    %574 = vadd.xlane.f32.xlu0 %v573
    %v575 = vpop.xlane.xlu0 %574
    %v576 = vrot.slane %v575, 4
    %v577 = vadd.f32 %v575, %v576
    %v578 = vrot.slane %v577, 2
    %v579 = vadd.f32 %v577, %v578
    %v580 = vrot.slane %v579, 1
    %v581 = vadd.f32 %v579, %v580
    %s582 = vtos %v581
    %v583 = vstv %s582
    %584 = vst [vmem:[#allocation8] sm:$0x1] %v583
    // Predicated region
    $region26: #{tpu_custom_call.1} parent=1 // pred_check
      _
    $region27: #{tpu_custom_call.1} parent=1 // pred_check_branch
      %586 = sbr.rel (0) target = $region29
    $region28: #{tpu_custom_call.1} parent=1 // pred_region
      %s588 = ssub.s32 16, 16
      %589 = vsyncadd [#allocation4], %s588
      %s591 = sshll.u32 [#allocation8], 4
      %s592 = int_to_ptr.vmem [resolvable:$true] %s591
      %594 = dma.vmem_to_hbm [thread:$0]  %s592, 16, %s3, [#allocation4]
    $region29: #{tpu_custom_call.1} parent=1 // pred_fallthru
      _
    // Predicated region
    $region30: #{tpu_custom_call.1} parent=1 // pred_check
      _
    $region31: #{tpu_custom_call.1} parent=1 // pred_check_branch
      %596 = sbr.rel (0) target = $region33
    $region32: #{tpu_custom_call.1} parent=1 // pred_region
      %597 = dma.done [#allocation4], 16
    $region33: #{tpu_custom_call.1} parent=1 // pred_fallthru
      _
    %598 = vsyncpa [#allocation3], 1
    %599 = vsyncpa [#allocation6], 1
    %600 = vsyncpa [#allocation4], 1

</llo_original>
